<compile_context>
chip_gen: v6e
topology: v6e:2x2x1
jax: 0.10.0
libtpu: 0.0.40
codegen_flags: <defaults>
</compile_context>

<pallas_src>
import functools

import jax
import jax.numpy as jnp
from jax import lax
from jax.experimental import pallas as pl
from jax.experimental.pallas import tpu as pltpu

T = 3.0          # distillation temperature (hard-coded in the PyTorch module)
EPS = 1e-7       # target_data + 10**(-7)


def _round_up(x, m):
    return ((x + m - 1) // m) * m


def _kldiv_kernel(pred_ref, label_ref, out_ref, *, n_rows, block_n, blocks_per_core):
    """Process one (block_n, C) tile of rows.

    pred_ref, label_ref : (block_n, C) VMEM tiles (any float dtype)
    out_ref             : (8, C) f32 VMEM block, resident across the inner
                          ("arbitrary") grid axis; holds this core's partial
                          sums. Final reduction happens in the wrapper.
    """
    p = pl.program_id(0)          # parallel (per-core) slice
    i = pl.program_id(1)          # sequential block index within the slice

    @pl.when(i == 0)
    def _():
        out_ref[...] = jnp.zeros_like(out_ref)

    inv_t = 1.0 / T
    x = pred_ref[...].astype(jnp.float32) * inv_t
    y = label_ref[...].astype(jnp.float32) * inv_t

    # log_softmax(pred / T, dim=1)  (numerically stable, reduce over lanes)
    x_max = jnp.max(x, axis=-1, keepdims=True)
    x_sh = x - x_max
    log_pred = x_sh - jnp.log(jnp.sum(jnp.exp(x_sh), axis=-1, keepdims=True))

    # softmax(label / T, dim=1) + EPS  (per-row reciprocal, broadcast-multiply)
    y_max = jnp.max(y, axis=-1, keepdims=True)
    y_exp = jnp.exp(y - y_max)
    y_inv = 1.0 / jnp.sum(y_exp, axis=-1, keepdims=True)
    target = y_exp * y_inv + EPS

    # target * (log(target) - log_softmax(pred/T))
    # (EPS kept inside the log for exact parity with the PyTorch module.)
    contrib = target * (jnp.log(target) - log_pred)

    gb = p * blocks_per_core + i              # global block index (unclamped)
    valid = n_rows - gb * block_n             # number of real rows in this tile

    def _accumulate(c):
        # Cheap sublane-group reduce (block_n, C) -> (8, C); accumulate in VMEM.
        part = jnp.sum(c.reshape(block_n // 8, 8, c.shape[-1]), axis=0)
        out_ref[...] += part

    # Interior (full) blocks skip the iota/compare/where entirely.
    @pl.when(valid >= block_n)
    def _():
        _accumulate(contrib)

    # Tail tile and/or over-allocated clamped slice: select-mask invalid rows
    # (NOT multiplicative masking: stale padded data may be Inf/NaN).
    @pl.when(valid < block_n)
    def _():
        row = lax.broadcasted_iota(jnp.int32, (block_n, 1), 0)
        _accumulate(jnp.where(row < valid, contrib, 0.0))


def _device_kind():
    try:
        return jax.devices()[0].device_kind.lower()
    except Exception:
        return ""


def _default_num_cores():
    # v7x has 2 TensorCores per chip; v5e/v6e (and older) have 1.
    return 2 if "v7" in _device_kind() else 1


def _vmem_budgets():
    """(input double-buffer budget, scoped vmem limit) in bytes, per generation."""
    try:
        cap = pltpu.get_tpu_info().vmem_capacity_bytes
    except Exception:
        cap = 64 * 1024 * 1024
    if cap >= 96 * 1024 * 1024:                   # v5e / v6e: 128 MiB physical
        return 48 * 1024 * 1024, 64 * 1024 * 1024
    return 24 * 1024 * 1024, 32 * 1024 * 1024     # v7x: 64 MiB physical


def kldiv_loss(pred, label, *, block_n=None, num_cores=None):
    """loss = T*T * sum_n sum_c target*(log(target) - log_softmax(pred/T)) / N"""
    assert pred.shape == label.shape and pred.ndim == 2
    N, C = pred.shape
    itemsize = jnp.dtype(pred.dtype).itemsize
    row_mult = 16 if itemsize < 4 else 8          # bf16 sublane packing

    input_budget, vmem_limit = _vmem_budgets()
    if block_n is None:
        # 2 inputs x 2 pipeline buffers x block_n x C x itemsize <= input_budget
        budget_bn = max(row_mult, input_budget // (2 * 2 * itemsize * C))
        block_n = min(8192, budget_bn, _round_up(N, row_mult))
    block_n = max(row_mult, _round_up(block_n, row_mult))

    if num_cores is None:
        num_cores = _default_num_cores()

    nblocks = pl.cdiv(N, block_n)                 # total row tiles
    ncores = max(1, min(num_cores, nblocks))      # parallel slices
    bpc = pl.cdiv(nblocks, ncores)                # blocks per parallel slice

    def in_idx(p, i):
        # Clamp so over-allocated slices point at a valid block (masked anyway).
        return (jnp.minimum(p * bpc + i, nblocks - 1), 0)

    kernel = functools.partial(
        _kldiv_kernel, n_rows=N, block_n=block_n, blocks_per_core=bpc)

    def _call(dim_sem):
        return pl.pallas_call(
            kernel,
            out_shape=jax.ShapeDtypeStruct((ncores * 8, C), jnp.float32),
            grid_spec=pltpu.PrefetchScalarGridSpec(
                num_scalar_prefetch=0,
                grid=(ncores, bpc),
                in_specs=[
                    pl.BlockSpec((block_n, C), in_idx),
                    pl.BlockSpec((block_n, C), in_idx),
                ],
                out_specs=pl.BlockSpec((8, C), lambda p, i: (p, 0)),
            ),
            compiler_params=pltpu.CompilerParams(
                dimension_semantics=dim_sem,
                vmem_limit_bytes=vmem_limit,
            ),
        )(pred, label)

    if ncores > 1:
        # v7x: ask for real per-TensorCore sharding of the leading axis; fall
        # back to plain "parallel" if this jax/generation rejects CORE_PARALLEL.
        try:
            partial = _call((pltpu.CORE_PARALLEL, pltpu.ARBITRARY))
        except Exception:
            partial = _call(("parallel", "arbitrary"))
    else:
        partial = _call(("parallel", "arbitrary"))

    # Final scalar reduce + T*T / batch scaling is trivial glue outside the kernel.
    return (T * T) * jnp.sum(partial) / N


def kldiv_loss_ref(pred, label):
    """Pure-JAX reference matching the PyTorch forward exactly."""
    predict = jax.nn.log_softmax(pred / T, axis=1)
    target = jax.nn.softmax(label / T, axis=1) + EPS
    return (T * T) * jnp.sum(target * (jnp.log(target) - predict)) / pred.shape[0]


if __name__ == "__main__":
    key = jax.random.PRNGKey(0)
    k1, k2 = jax.random.split(key)

    # Small but non-multiple-of-8 batch to exercise the tail-masking path.
    N, C = 60, 128
    pred = jax.random.normal(k1, (N, C), dtype=jnp.float32)
    label = jax.random.normal(k2, (N, C), dtype=jnp.float32)

    ref = jax.block_until_ready(kldiv_loss_ref(pred, label))

    # Default auto-sized tile (single partial block, masked tail, tail pl.when).
    loss_big = jax.block_until_ready(kldiv_loss(pred, label))
    # Small explicit tile: exercises multi-step accumulation, (possible) 2-core
    # split, index clamping, full-block fast path and tail masking.
    loss_small = jax.block_until_ready(kldiv_loss(pred, label, block_n=16))

    assert jnp.allclose(loss_big, ref, rtol=1e-5, atol=1e-5), (loss_big, ref)
    assert jnp.allclose(loss_small, ref, rtol=1e-5, atol=1e-5), (loss_small, ref)

    # bf16 streaming path (halves HBM traffic on bandwidth-bound v5e/v6e).
    # Kernel math stays f32, so compare against the reference on the same
    # bf16-quantized inputs.
    pred_bf = pred.astype(jnp.bfloat16)
    label_bf = label.astype(jnp.bfloat16)
    ref_bf = jax.block_until_ready(
        kldiv_loss_ref(pred_bf.astype(jnp.float32), label_bf.astype(jnp.float32)))
    loss_bf = jax.block_until_ready(kldiv_loss(pred_bf, label_bf))
    assert jnp.allclose(loss_bf, ref_bf, rtol=1e-4, atol=1e-4), (loss_bf, ref_bf)

    print("KERNEL_OK")
</pallas_src>

<mosaic_0001>
module attributes {stable_mosaic.version = 11 : i64} {
  func.func @_kldiv_kernel(%arg0: i32, %arg1: i32, %arg2: memref<64x128xf32, #tpu.memory_space<vmem>>, %arg3: memref<64x128xf32, #tpu.memory_space<vmem>>, %arg4: memref<8x128xf32, #tpu.memory_space<vmem>>) attributes {dimension_semantics = [#tpu.dimension_semantics<parallel>, #tpu.dimension_semantics<arbitrary>], iteration_bounds = array<i64: 1, 1>, scalar_prefetch = 0 : i64, scratch_operands = 0 : i64, tpu.core_type = #tpu.core_type<tc>, window_params = [{transform_indices = @transform_0, window_bounds = array<i64: 64, 128>}, {transform_indices = @transform_1, window_bounds = array<i64: 64, 128>}, {transform_indices = @transform_2, window_bounds = array<i64: 8, 128>}]} {
    %c0_i32 = arith.constant 0 : i32
    %0 = arith.cmpi eq, %arg1, %c0_i32 : i32
    %1 = arith.extui %0 : i1 to i32
    %c0_i32_0 = arith.constant 0 : i32
    %2 = arith.cmpi ne, %1, %c0_i32_0 : i32
    scf.if %2 {
      %cst_15 = arith.constant 0.000000e+00 : f32
      %45 = vector.broadcast %cst_15 : f32 to vector<8x128xf32>
      %c0_16 = arith.constant 0 : index
      %c0_17 = arith.constant 0 : index
      %46 = vector.load %arg4[%c0_16, %c0_17] : memref<8x128xf32, #tpu.memory_space<vmem>>, vector<8x128xf32>
      tpu.vector_store %arg4[%c0_16, %c0_17], %45 {strides = array<i32>} : memref<8x128xf32, #tpu.memory_space<vmem>>, vector<8x128xf32>,
    } else {
    }
    %c0 = arith.constant 0 : index
    %c0_1 = arith.constant 0 : index
    %3 = vector.load %arg2[%c0, %c0_1] : memref<64x128xf32, #tpu.memory_space<vmem>>, vector<64x128xf32>
    %cst = arith.constant 0.333333343 : f32
    %4 = vector.broadcast %cst : f32 to vector<64x128xf32>
    %5 = arith.mulf %3, %4 : vector<64x128xf32>
    %c0_2 = arith.constant 0 : index
    %c0_3 = arith.constant 0 : index
    %6 = vector.load %arg3[%c0_2, %c0_3] : memref<64x128xf32, #tpu.memory_space<vmem>>, vector<64x128xf32>
    %cst_4 = arith.constant 0.333333343 : f32
    %7 = vector.broadcast %cst_4 : f32 to vector<64x128xf32>
    %8 = arith.mulf %6, %7 : vector<64x128xf32>
    %cst_5 = arith.constant dense<0xFF800000> : vector<64xf32>
    %9 = vector.multi_reduction <maximumf>, %5, %cst_5 [1] : vector<64x128xf32> to vector<64xf32>
    %10 = vector.shape_cast %9 : vector<64xf32> to vector<64x1xf32>
    %11 = vector.broadcast %10 : vector<64x1xf32> to vector<64x128xf32>
    %12 = arith.subf %5, %11 : vector<64x128xf32>
    %13 = math.exp %12 : vector<64x128xf32>
    %cst_6 = arith.constant dense<0.000000e+00> : vector<64xf32>
    %14 = vector.multi_reduction <add>, %13, %cst_6 [1] : vector<64x128xf32> to vector<64xf32>
    %15 = vector.shape_cast %14 : vector<64xf32> to vector<64x1xf32>
    %16 = math.log %15 : vector<64x1xf32>
    %17 = vector.broadcast %16 : vector<64x1xf32> to vector<64x128xf32>
    %18 = arith.subf %12, %17 : vector<64x128xf32>
    %cst_7 = arith.constant dense<0xFF800000> : vector<64xf32>
    %19 = vector.multi_reduction <maximumf>, %8, %cst_7 [1] : vector<64x128xf32> to vector<64xf32>
    %20 = vector.shape_cast %19 : vector<64xf32> to vector<64x1xf32>
    %21 = vector.broadcast %20 : vector<64x1xf32> to vector<64x128xf32>
    %22 = arith.subf %8, %21 : vector<64x128xf32>
    %23 = math.exp %22 : vector<64x128xf32>
    %cst_8 = arith.constant dense<0.000000e+00> : vector<64xf32>
    %24 = vector.multi_reduction <add>, %23, %cst_8 [1] : vector<64x128xf32> to vector<64xf32>
    %25 = vector.shape_cast %24 : vector<64xf32> to vector<64x1xf32>
    %cst_9 = arith.constant 1.000000e+00 : f32
    %26 = vector.broadcast %cst_9 : f32 to vector<64x1xf32>
    %27 = arith.divf %26, %25 : vector<64x1xf32>
    %28 = vector.broadcast %27 : vector<64x1xf32> to vector<64x128xf32>
    %29 = arith.mulf %23, %28 : vector<64x128xf32>
    %cst_10 = arith.constant 1.000000e-07 : f32
    %30 = vector.broadcast %cst_10 : f32 to vector<64x128xf32>
    %31 = arith.addf %29, %30 : vector<64x128xf32>
    %32 = math.log %31 : vector<64x128xf32>
    %33 = arith.subf %32, %18 : vector<64x128xf32>
    %34 = arith.mulf %31, %33 : vector<64x128xf32>
    %c1_i32 = arith.constant 1 : i32
    %35 = arith.muli %arg0, %c1_i32 : i32
    %36 = arith.addi %35, %arg1 : i32
    %c64_i32 = arith.constant 64 : i32
    %37 = arith.muli %36, %c64_i32 : i32
    %c60_i32 = arith.constant 60 : i32
    %38 = arith.subi %c60_i32, %37 : i32
    %c64_i32_11 = arith.constant 64 : i32
    %39 = arith.cmpi sge, %38, %c64_i32_11 : i32
    %40 = arith.extui %39 : i1 to i32
    %c0_i32_12 = arith.constant 0 : i32
    %41 = arith.cmpi ne, %40, %c0_i32_12 : i32
    scf.if %41 {
      %45 = vector.shape_cast %34 : vector<64x128xf32> to vector<8x8x128xf32>
      %cst_15 = arith.constant dense<0.000000e+00> : vector<8x128xf32>
      %46 = vector.multi_reduction <add>, %45, %cst_15 [0] : vector<8x8x128xf32> to vector<8x128xf32>
      %c0_16 = arith.constant 0 : index
      %c0_17 = arith.constant 0 : index
      %47 = vector.load %arg4[%c0_16, %c0_17] : memref<8x128xf32, #tpu.memory_space<vmem>>, vector<8x128xf32>
      %48 = arith.addf %47, %46 : vector<8x128xf32>
      %c0_18 = arith.constant 0 : index
      %c0_19 = arith.constant 0 : index
      %49 = vector.load %arg4[%c0_18, %c0_19] : memref<8x128xf32, #tpu.memory_space<vmem>>, vector<8x128xf32>
      tpu.vector_store %arg4[%c0_18, %c0_19], %48 {strides = array<i32>} : memref<8x128xf32, #tpu.memory_space<vmem>>, vector<8x128xf32>,
    } else {
    }
    %c64_i32_13 = arith.constant 64 : i32
    %42 = arith.cmpi slt, %38, %c64_i32_13 : i32
    %43 = arith.extui %42 : i1 to i32
    %c0_i32_14 = arith.constant 0 : i32
    %44 = arith.cmpi ne, %43, %c0_i32_14 : i32
    scf.if %44 {
      %45 = tpu.iota {dimensions = array<i32: 0>} : vector<64x1xi32>
      %46 = vector.broadcast %38 : i32 to vector<64x1xi32>
      %47 = arith.cmpi slt, %45, %46 : vector<64x1xi32>
      %cst_15 = arith.constant 0.000000e+00 : f32
      %48 = vector.shape_cast %47 : vector<64x1xi1> to vector<64x1xi1>
      %49 = vector.broadcast %48 : vector<64x1xi1> to vector<64x128xi1>
      %50 = vector.broadcast %cst_15 : f32 to vector<64x128xf32>
      %51 = arith.select %49, %34, %50 : vector<64x128xi1>, vector<64x128xf32>
      %52 = vector.shape_cast %51 : vector<64x128xf32> to vector<8x8x128xf32>
      %cst_16 = arith.constant dense<0.000000e+00> : vector<8x128xf32>
      %53 = vector.multi_reduction <add>, %52, %cst_16 [0] : vector<8x8x128xf32> to vector<8x128xf32>
      %c0_17 = arith.constant 0 : index
      %c0_18 = arith.constant 0 : index
      %54 = vector.load %arg4[%c0_17, %c0_18] : memref<8x128xf32, #tpu.memory_space<vmem>>, vector<8x128xf32>
      %55 = arith.addf %54, %53 : vector<8x128xf32>
      %c0_19 = arith.constant 0 : index
      %c0_20 = arith.constant 0 : index
      %56 = vector.load %arg4[%c0_19, %c0_20] : memref<8x128xf32, #tpu.memory_space<vmem>>, vector<8x128xf32>
      tpu.vector_store %arg4[%c0_19, %c0_20], %55 {strides = array<i32>} : memref<8x128xf32, #tpu.memory_space<vmem>>, vector<8x128xf32>,
    } else {
    }
    return
  }
  func.func @transform_0(%arg0: i32, %arg1: i32) -> (i32, i32) {
    %c1_i32 = arith.constant 1 : i32
    %0 = arith.muli %arg0, %c1_i32 : i32
    %1 = arith.addi %0, %arg1 : i32
    %c0_i32 = arith.constant 0 : i32
    %2 = arith.minsi %1, %c0_i32 : i32
    %c0_i32_0 = arith.constant 0 : i32
    %c0_i32_1 = arith.constant 0 : i32
    return %2, %c0_i32_0 : i32, i32
  }
  func.func @transform_1(%arg0: i32, %arg1: i32) -> (i32, i32) {
    %c1_i32 = arith.constant 1 : i32
    %0 = arith.muli %arg0, %c1_i32 : i32
    %1 = arith.addi %0, %arg1 : i32
    %c0_i32 = arith.constant 0 : i32
    %2 = arith.minsi %1, %c0_i32 : i32
    %c0_i32_0 = arith.constant 0 : i32
    %c0_i32_1 = arith.constant 0 : i32
    return %2, %c0_i32_0 : i32, i32
  }
  func.func @transform_2(%arg0: i32, %arg1: i32) -> (i32, i32) {
    %c0_i32 = arith.constant 0 : i32
    %c0_i32_0 = arith.constant 0 : i32
    return %arg0, %c0_i32 : i32, i32
  }
}

</mosaic_0001>

<llo_original>
// kernel: tpu_custom_call.1
$region0: #{tpu_custom_call.1}
  #allocation0 [shape = 'u32[]', space=smem, size = 0x4, offset = 0x4, fixed_abs, tag = 'smem constant byte address 0x4 - core index']
  #allocation1 [shape = 'u32[144,128]{1,0:T(1,128)}', space=vmem, size = 0x12000, scoped, tag = 'internal scratch']
  %s0 = inlined_call_operand.hbm [shape: f32[60,128], index: 0, kind: input, shape index: {}]
  %s1 = inlined_call_operand.hbm [shape: f32[60,128], index: 1, kind: input, shape index: {}]
  %s2 = inlined_call_operand.hbm [shape: f32[8,128], index: 2, kind: output, shape index: {}]
  %s3 = sld [smem:[#allocation0]]
  $region38: #{tpu_custom_call.1} parent=0
    _
  %s5 = ssub.s32 1, %s3
  %s6 = scalar_select 0, %s5, %s3
  $region1: #{tpu_custom_call.1} parent=0
    #allocation2 [shape = 'u8[32768]{0}', space=vmem, size = 0x8000, scoped, tag = 'input window, operand 0, single buffered']
    #allocation3 [shape = 's32[1]{0}', space=sflag, size = 0x4, scoped, tag = 'scoped memory for tpu_custom_call.1']
    #allocation4 [shape = 's32[1]{0}', space=sflag, size = 0x4, scoped, tag = 'scoped memory for tpu_custom_call.1']
    #allocation5 [shape = 'u8[32768]{0}', space=vmem, size = 0x8000, scoped, tag = 'input window, operand 1, single buffered']
    #allocation6 [shape = 's32[1]{0}', space=sflag, size = 0x4, scoped, tag = 'scoped memory for tpu_custom_call.1']
    #allocation7 [shape = 'u8[4096]{0}', space=vmem, size = 0x1000, scoped, tag = 'output window, operand 0, single buffered']
    %7 = vsyncpa [#allocation3], 0
    %8 = vsyncpa [#allocation6], 0
    %9 = vsyncpa [#allocation4], 0
    // Predicated region
    $region2: #{tpu_custom_call.1} parent=1 // pred_check
      _
    $region3: #{tpu_custom_call.1} parent=1 // pred_check_branch
      %11 = sbr.rel (0) target = $region5
    $region4: #{tpu_custom_call.1} parent=1 // pred_region
      %s12 = sadd.s32 0, 0
      %p13 = scmp.lt.s32.totalorder %s12, 0
      %s14 = scalar_select %p13, %s12, 0
      %s15 = smul.u32 8, %s14
      %s17 = ssub.s32 1024, 1024
      %18 = vsyncadd [#allocation3], %s17
      %s19 = smul.addr %s15, 128
      %s20 = scalar_lea.hbm %s0, %s19
      %s21 = sshll.u32 [#allocation2], 4
      %s22 = int_to_ptr.vmem [resolvable:$true] %s21
      %27 = dma.hbm_to_vmem [thread:$0]  %s20, 1024, %s22, [#allocation3], 128, 128, 8
    $region5: #{tpu_custom_call.1} parent=1 // pred_fallthru
      _
    // Predicated region
    $region6: #{tpu_custom_call.1} parent=1 // pred_check
      _
    $region7: #{tpu_custom_call.1} parent=1 // pred_check_branch
      %29 = sbr.rel (0) target = $region9
    $region8: #{tpu_custom_call.1} parent=1 // pred_region
      %s30 = sadd.s32 0, 0
      %p31 = scmp.lt.s32.totalorder %s30, 0
      %s32 = scalar_select %p31, %s30, 0
      %s33 = smul.u32 8, %s32
      %s35 = ssub.s32 1024, 1024
      %36 = vsyncadd [#allocation6], %s35
      %s37 = smul.addr %s33, 128
      %s38 = scalar_lea.hbm %s1, %s37
      %s39 = sshll.u32 [#allocation5], 4
      %s40 = int_to_ptr.vmem [resolvable:$true] %s39
      %45 = dma.hbm_to_vmem [thread:$0]  %s38, 1024, %s40, [#allocation6], 128, 128, 8
    $region9: #{tpu_custom_call.1} parent=1 // pred_fallthru
      _
    // Predicated region
    $region10: #{tpu_custom_call.1} parent=1 // pred_check
      _
    $region11: #{tpu_custom_call.1} parent=1 // pred_check_branch
      %47 = sbr.rel (0) target = $region13
    $region12: #{tpu_custom_call.1} parent=1 // pred_region
      %48 = dma.done [#allocation3], 1024
    $region13: #{tpu_custom_call.1} parent=1 // pred_fallthru
      _
    // Predicated region
    $region14: #{tpu_custom_call.1} parent=1 // pred_check
      _
    $region15: #{tpu_custom_call.1} parent=1 // pred_check_branch
      %50 = sbr.rel (0) target = $region17
    $region16: #{tpu_custom_call.1} parent=1 // pred_region
      %51 = dma.done [#allocation6], 1024
    $region17: #{tpu_custom_call.1} parent=1 // pred_fallthru
      _
    %s52 = sadd.s32 0, 0
    %p53 = scmp.lt.s32.totalorder %s52, 0
    %s54 = scalar_select %p53, %s52, 0
    %s55 = smul.u32 8, %s54
    %s56 = sadd.s32 0, 0
    %p57 = scmp.lt.s32.totalorder %s56, 0
    %s58 = scalar_select %p57, %s56, 0
    %s59 = smul.u32 8, %s58
    %p60 = scmp.eq.s32.totalorder 0, 0
    // Predicated region
    $region18: #{tpu_custom_call.1} parent=1 // pred_check
      %p61 = pneg %p60
    $region19: #{tpu_custom_call.1} parent=1 // pred_check_branch
      %63 = sbr.rel (%p61) target = $region21
    $region20: #{tpu_custom_call.1} parent=1 // pred_region
      %64 = vst [vmem:[#allocation7] sm:$0xff] 0.0
    $region21: #{tpu_custom_call.1} parent=1 // pred_fallthru
      _
    %v65 = vld [vmem:[#allocation2] sm:$0xff]
    %v66 = vld [vmem:[#allocation2 + $0x8] sm:$0xff]
    %v67 = vld [vmem:[#allocation2 + $0x10] sm:$0xff]
    %v68 = vld [vmem:[#allocation2 + $0x18] sm:$0xff]
    %v69 = vld [vmem:[#allocation2 + $0x20] sm:$0xff]
    %v70 = vld [vmem:[#allocation2 + $0x28] sm:$0xff]
    %v71 = vld [vmem:[#allocation2 + $0x30] sm:$0xff]
    %v72 = vld [vmem:[#allocation2 + $0x38] sm:$0xff]
    %v73 = vmul.f32 %v65, 0.33333334
    %v74 = vmul.f32 %v66, 0.33333334
    %v75 = vmul.f32 %v67, 0.33333334
    %v76 = vmul.f32 %v68, 0.33333334
    %v77 = vmul.f32 %v69, 0.33333334
    %v78 = vmul.f32 %v70, 0.33333334
    %v79 = vmul.f32 %v71, 0.33333334
    %v80 = vmul.f32 %v72, 0.33333334
    %v81 = vld [vmem:[#allocation5] sm:$0xff]
    %v82 = vld [vmem:[#allocation5 + $0x8] sm:$0xff]
    %v83 = vld [vmem:[#allocation5 + $0x10] sm:$0xff]
    %v84 = vld [vmem:[#allocation5 + $0x18] sm:$0xff]
    %v85 = vld [vmem:[#allocation5 + $0x20] sm:$0xff]
    %v86 = vld [vmem:[#allocation5 + $0x28] sm:$0xff]
    %v87 = vld [vmem:[#allocation5 + $0x30] sm:$0xff]
    %v88 = vld [vmem:[#allocation5 + $0x38] sm:$0xff]
    %v89 = vmul.f32 %v81, 0.33333334
    %v90 = vmul.f32 %v82, 0.33333334
    %v91 = vmul.f32 %v83, 0.33333334
    %v92 = vmul.f32 %v84, 0.33333334
    %v93 = vmul.f32 %v85, 0.33333334
    %v94 = vmul.f32 %v86, 0.33333334
    %v95 = vmul.f32 %v87, 0.33333334
    %v96 = vmul.f32 %v88, 0.33333334
    %97 = vmax.xlane.f32.xlu0 %v73
    %v98 = vpop.xlane.xlu0 %97
    %99 = vmax.xlane.f32.xlu0 %v74
    %v100 = vpop.xlane.xlu0 %99
    %101 = vmax.xlane.f32.xlu0 %v75
    %v102 = vpop.xlane.xlu0 %101
    %103 = vmax.xlane.f32.xlu0 %v76
    %v104 = vpop.xlane.xlu0 %103
    %105 = vmax.xlane.f32.xlu0 %v77
    %v106 = vpop.xlane.xlu0 %105
    %107 = vmax.xlane.f32.xlu0 %v78
    %v108 = vpop.xlane.xlu0 %107
    %109 = vmax.xlane.f32.xlu0 %v79
    %v110 = vpop.xlane.xlu0 %109
    %111 = vmax.xlane.f32.xlu0 %v80
    %v112 = vpop.xlane.xlu0 %111
    %v113 = vsub.f32 %v73, %v98
    %v114 = vsub.f32 %v74, %v100
    %v115 = vsub.f32 %v75, %v102
    %v116 = vsub.f32 %v76, %v104
    %v117 = vsub.f32 %v77, %v106
    %v118 = vsub.f32 %v78, %v108
    %v119 = vsub.f32 %v79, %v110
    %v120 = vsub.f32 %v80, %v112
    %v121 = vmul.f32 %v113, 1.442695
    %v122 = vpow.pop %v121
    %v123 = vmul.f32 %v114, 1.442695
    %v124 = vpow.pop %v123
    %v125 = vmul.f32 %v115, 1.442695
    %v126 = vpow.pop %v125
    %v127 = vmul.f32 %v116, 1.442695
    %v128 = vpow.pop %v127
    %v129 = vmul.f32 %v117, 1.442695
    %v130 = vpow.pop %v129
    %v131 = vmul.f32 %v118, 1.442695
    %v132 = vpow.pop %v131
    %v133 = vmul.f32 %v119, 1.442695
    %v134 = vpow.pop %v133
    %v135 = vmul.f32 %v120, 1.442695
    %v136 = vpow.pop %v135
    %137 = vadd.xlane.f32.xlu0 %v122
    %v138 = vpop.xlane.xlu0 %137
    %139 = vadd.xlane.f32.xlu0 %v124
    %v140 = vpop.xlane.xlu0 %139
    %141 = vadd.xlane.f32.xlu0 %v126
    %v142 = vpop.xlane.xlu0 %141
    %143 = vadd.xlane.f32.xlu0 %v128
    %v144 = vpop.xlane.xlu0 %143
    %145 = vadd.xlane.f32.xlu0 %v130
    %v146 = vpop.xlane.xlu0 %145
    %147 = vadd.xlane.f32.xlu0 %v132
    %v148 = vpop.xlane.xlu0 %147
    %149 = vadd.xlane.f32.xlu0 %v134
    %v150 = vpop.xlane.xlu0 %149
    %151 = vadd.xlane.f32.xlu0 %v136
    %v152 = vpop.xlane.xlu0 %151
    %v153 = vlog2.pop %v138
    %v154 = vmul.f32 %v153, 0.6931472
    %v155 = vlog2.pop %v140
    %v156 = vmul.f32 %v155, 0.6931472
    %v157 = vlog2.pop %v142
    %v158 = vmul.f32 %v157, 0.6931472
    %v159 = vlog2.pop %v144
    %v160 = vmul.f32 %v159, 0.6931472
    %v161 = vlog2.pop %v146
    %v162 = vmul.f32 %v161, 0.6931472
    %v163 = vlog2.pop %v148
    %v164 = vmul.f32 %v163, 0.6931472
    %v165 = vlog2.pop %v150
    %v166 = vmul.f32 %v165, 0.6931472
    %v167 = vlog2.pop %v152
    %v168 = vmul.f32 %v167, 0.6931472
    %v169 = vsub.f32 %v113, %v154
    %v170 = vsub.f32 %v114, %v156
    %v171 = vsub.f32 %v115, %v158
    %v172 = vsub.f32 %v116, %v160
    %v173 = vsub.f32 %v117, %v162
    %v174 = vsub.f32 %v118, %v164
    %v175 = vsub.f32 %v119, %v166
    %v176 = vsub.f32 %v120, %v168
    %177 = vmax.xlane.f32.xlu0 %v89
    %v178 = vpop.xlane.xlu0 %177
    %179 = vmax.xlane.f32.xlu0 %v90
    %v180 = vpop.xlane.xlu0 %179
    %181 = vmax.xlane.f32.xlu0 %v91
    %v182 = vpop.xlane.xlu0 %181
    %183 = vmax.xlane.f32.xlu0 %v92
    %v184 = vpop.xlane.xlu0 %183
    %185 = vmax.xlane.f32.xlu0 %v93
    %v186 = vpop.xlane.xlu0 %185
    %187 = vmax.xlane.f32.xlu0 %v94
    %v188 = vpop.xlane.xlu0 %187
    %189 = vmax.xlane.f32.xlu0 %v95
    %v190 = vpop.xlane.xlu0 %189
    %191 = vmax.xlane.f32.xlu0 %v96
    %v192 = vpop.xlane.xlu0 %191
    %v193 = vsub.f32 %v89, %v178
    %v194 = vsub.f32 %v90, %v180
    %v195 = vsub.f32 %v91, %v182
    %v196 = vsub.f32 %v92, %v184
    %v197 = vsub.f32 %v93, %v186
    %v198 = vsub.f32 %v94, %v188
    %v199 = vsub.f32 %v95, %v190
    %v200 = vsub.f32 %v96, %v192
    %v201 = vmul.f32 %v193, 1.442695
    %v202 = vpow.pop %v201
    %v203 = vmul.f32 %v194, 1.442695
    %v204 = vpow.pop %v203
    %v205 = vmul.f32 %v195, 1.442695
    %v206 = vpow.pop %v205
    %v207 = vmul.f32 %v196, 1.442695
    %v208 = vpow.pop %v207
    %v209 = vmul.f32 %v197, 1.442695
    %v210 = vpow.pop %v209
    %v211 = vmul.f32 %v198, 1.442695
    %v212 = vpow.pop %v211
    %v213 = vmul.f32 %v199, 1.442695
    %v214 = vpow.pop %v213
    %v215 = vmul.f32 %v200, 1.442695
    %v216 = vpow.pop %v215
    %217 = vadd.xlane.f32.xlu0 %v202
    %v218 = vpop.xlane.xlu0 %217
    %219 = vadd.xlane.f32.xlu0 %v204
    %v220 = vpop.xlane.xlu0 %219
    %221 = vadd.xlane.f32.xlu0 %v206
    %v222 = vpop.xlane.xlu0 %221
    %223 = vadd.xlane.f32.xlu0 %v208
    %v224 = vpop.xlane.xlu0 %223
    %225 = vadd.xlane.f32.xlu0 %v210
    %v226 = vpop.xlane.xlu0 %225
    %227 = vadd.xlane.f32.xlu0 %v212
    %v228 = vpop.xlane.xlu0 %227
    %229 = vadd.xlane.f32.xlu0 %v214
    %v230 = vpop.xlane.xlu0 %229
    %231 = vadd.xlane.f32.xlu0 %v216
    %v232 = vpop.xlane.xlu0 %231
    %v233 = vrcp.pop %v218
    %v234 = vmul.f32 1.0, %v233
    %v235 = vrcp.pop %v220
    %v236 = vmul.f32 1.0, %v235
    %v237 = vrcp.pop %v222
    %v238 = vmul.f32 1.0, %v237
    %v239 = vrcp.pop %v224
    %v240 = vmul.f32 1.0, %v239
    %v241 = vrcp.pop %v226
    %v242 = vmul.f32 1.0, %v241
    %v243 = vrcp.pop %v228
    %v244 = vmul.f32 1.0, %v243
    %v245 = vrcp.pop %v230
    %v246 = vmul.f32 1.0, %v245
    %v247 = vrcp.pop %v232
    %v248 = vmul.f32 1.0, %v247
    %v249 = vmul.f32 %v202, %v234
    %v250 = vmul.f32 %v204, %v236
    %v251 = vmul.f32 %v206, %v238
    %v252 = vmul.f32 %v208, %v240
    %v253 = vmul.f32 %v210, %v242
    %v254 = vmul.f32 %v212, %v244
    %v255 = vmul.f32 %v214, %v246
    %v256 = vmul.f32 %v216, %v248
    %v257 = vadd.f32 %v249, 1e-07
    %v258 = vadd.f32 %v250, 1e-07
    %v259 = vadd.f32 %v251, 1e-07
    %v260 = vadd.f32 %v252, 1e-07
    %v261 = vadd.f32 %v253, 1e-07
    %v262 = vadd.f32 %v254, 1e-07
    %v263 = vadd.f32 %v255, 1e-07
    %v264 = vadd.f32 %v256, 1e-07
    %v265 = vlog2.pop %v257
    %v266 = vmul.f32 %v265, 0.6931472
    %v267 = vlog2.pop %v258
    %v268 = vmul.f32 %v267, 0.6931472
    %v269 = vlog2.pop %v259
    %v270 = vmul.f32 %v269, 0.6931472
    %v271 = vlog2.pop %v260
    %v272 = vmul.f32 %v271, 0.6931472
    %v273 = vlog2.pop %v261
    %v274 = vmul.f32 %v273, 0.6931472
    %v275 = vlog2.pop %v262
    %v276 = vmul.f32 %v275, 0.6931472
    %v277 = vlog2.pop %v263
    %v278 = vmul.f32 %v277, 0.6931472
    %v279 = vlog2.pop %v264
    %v280 = vmul.f32 %v279, 0.6931472
    %v281 = vsub.f32 %v266, %v169
    %v282 = vsub.f32 %v268, %v170
    %v283 = vsub.f32 %v270, %v171
    %v284 = vsub.f32 %v272, %v172
    %v285 = vsub.f32 %v274, %v173
    %v286 = vsub.f32 %v276, %v174
    %v287 = vsub.f32 %v278, %v175
    %v288 = vsub.f32 %v280, %v176
    %v289 = vmul.f32 %v257, %v281
    %v290 = vmul.f32 %v258, %v282
    %v291 = vmul.f32 %v259, %v283
    %v292 = vmul.f32 %v260, %v284
    %v293 = vmul.f32 %v261, %v285
    %v294 = vmul.f32 %v262, %v286
    %v295 = vmul.f32 %v263, %v287
    %v296 = vmul.f32 %v264, %v288
    %s297 = sadd.s32 0, 0
    %s298 = smul.u32 %s297, 64
    %s299 = ssub.s32 60, %s298
    %p300 = scmp.ge.s32.totalorder %s299, 64
    // Predicated region
    $region22: #{tpu_custom_call.1} parent=1 // pred_check
      %p301 = pneg %p300
    $region23: #{tpu_custom_call.1} parent=1 // pred_check_branch
      %303 = sbr.rel (%p301) target = $region25
    $region24: #{tpu_custom_call.1} parent=1 // pred_region
      %v304 = vadd.f32 %v289, %v290
      %v305 = vadd.f32 %v304, %v291
      %v306 = vadd.f32 %v305, %v292
      %v307 = vadd.f32 %v306, %v293
      %v308 = vadd.f32 %v307, %v294
      %v309 = vadd.f32 %v308, %v295
      %v310 = vadd.f32 %v309, %v296
      %v311 = vld [vmem:[#allocation7] sm:$0xff]
      %v312 = vadd.f32 %v311, %v310
      %313 = vst [vmem:[#allocation7] sm:$0xff] %v312
    $region25: #{tpu_custom_call.1} parent=1 // pred_fallthru
      _
    %p314 = scmp.lt.s32.totalorder %s299, 64
    // Predicated region
    $region26: #{tpu_custom_call.1} parent=1 // pred_check
      %p315 = pneg %p314
    $region27: #{tpu_custom_call.1} parent=1 // pred_check_branch
      %317 = sbr.rel (%p315) target = $region29
    $region28: #{tpu_custom_call.1} parent=1 // pred_region
      %v318 = vlaneseq
      %v319 = vshrl.u32 %v318, 7
      %v320 = vadd.s32 %v319, 8
      %v321 = vadd.s32 %v319, 16
      %v322 = vadd.s32 %v319, 24
      %v323 = vadd.s32 %v319, 32
      %v324 = vadd.s32 %v319, 40
      %v325 = vadd.s32 %v319, 48
      %v326 = vadd.s32 %v319, 56
      %v327 = vstv %s299
      %vm328 = vcmp.lt.s32.totalorder %v319, %v327
      %vm329 = vcmp.lt.s32.totalorder %v320, %v327
      %vm330 = vcmp.lt.s32.totalorder %v321, %v327
      %vm331 = vcmp.lt.s32.totalorder %v322, %v327
      %vm332 = vcmp.lt.s32.totalorder %v323, %v327
      %vm333 = vcmp.lt.s32.totalorder %v324, %v327
      %vm334 = vcmp.lt.s32.totalorder %v325, %v327
      %vm335 = vcmp.lt.s32.totalorder %v326, %v327
      %v336 = vsel %vm328, 1, 0
      %v337 = vsel %vm329, 1, 0
      %v338 = vsel %vm330, 1, 0
      %v339 = vsel %vm331, 1, 0
      %v340 = vsel %vm332, 1, 0
      %v341 = vsel %vm333, 1, 0
      %v342 = vsel %vm334, 1, 0
      %v343 = vsel %vm335, 1, 0
      %vm344 = vcmp.eq.s32.totalorder %v336, 1
      %vm345 = vcmp.eq.s32.totalorder %v337, 1
      %vm346 = vcmp.eq.s32.totalorder %v338, 1
      %vm347 = vcmp.eq.s32.totalorder %v339, 1
      %vm348 = vcmp.eq.s32.totalorder %v340, 1
      %vm349 = vcmp.eq.s32.totalorder %v341, 1
      %vm350 = vcmp.eq.s32.totalorder %v342, 1
      %vm351 = vcmp.eq.s32.totalorder %v343, 1
      %v352 = vsel %vm344, %v289, 0.0
      %v353 = vsel %vm345, %v290, 0.0
      %v354 = vsel %vm346, %v291, 0.0
      %v355 = vsel %vm347, %v292, 0.0
      %v356 = vsel %vm348, %v293, 0.0
      %v357 = vsel %vm349, %v294, 0.0
      %v358 = vsel %vm350, %v295, 0.0
      %v359 = vsel %vm351, %v296, 0.0
      %v360 = vadd.f32 %v352, %v353
      %v361 = vadd.f32 %v360, %v354
      %v362 = vadd.f32 %v361, %v355
      %v363 = vadd.f32 %v362, %v356
      %v364 = vadd.f32 %v363, %v357
      %v365 = vadd.f32 %v364, %v358
      %v366 = vadd.f32 %v365, %v359
      %v367 = vld [vmem:[#allocation7] sm:$0xff]
      %v368 = vadd.f32 %v367, %v366
      %369 = vst [vmem:[#allocation7] sm:$0xff] %v368
    $region29: #{tpu_custom_call.1} parent=1 // pred_fallthru
      _
    // Predicated region
    $region30: #{tpu_custom_call.1} parent=1 // pred_check
      _
    $region31: #{tpu_custom_call.1} parent=1 // pred_check_branch
      %371 = sbr.rel (0) target = $region33
    $region32: #{tpu_custom_call.1} parent=1 // pred_region
      %s373 = ssub.s32 128, 128
      %374 = vsyncadd [#allocation4], %s373
      %s376 = sshll.u32 [#allocation7], 4
      %s377 = int_to_ptr.vmem [resolvable:$true] %s376
      %379 = dma.vmem_to_hbm [thread:$0]  %s377, 128, %s2, [#allocation4]
    $region33: #{tpu_custom_call.1} parent=1 // pred_fallthru
      _
    // Predicated region
    $region34: #{tpu_custom_call.1} parent=1 // pred_check
      _
    $region35: #{tpu_custom_call.1} parent=1 // pred_check_branch
      %381 = sbr.rel (0) target = $region37
    $region36: #{tpu_custom_call.1} parent=1 // pred_region
      %382 = dma.done [#allocation4], 128
    $region37: #{tpu_custom_call.1} parent=1 // pred_fallthru
      _
    %383 = vsyncpa [#allocation3], 1
    %384 = vsyncpa [#allocation6], 1
    %385 = vsyncpa [#allocation4], 1

</llo_original>
